<compile_context>
chip_gen: v7x
topology: tpu7x:2x2x1
jax: 0.10.0
libtpu: 0.0.40
codegen_flags: <defaults>
</compile_context>

<pallas_src>
import functools

import jax
import jax.numpy as jnp
from jax import lax
from jax.experimental import pallas as pl
from jax.experimental.pallas import tpu as pltpu


_SMALL_C_MAX = 16       # below this, skip the MXU entirely
_BF16_MXU_MIN_C = 128   # above this, feed the MXU bf16 operands (f32 accumulate)


def _softmax_lastdim(energy):
    """Numerically stable softmax over the last axis, f32, exact divide."""
    m = jnp.max(energy, axis=-1, keepdims=True)
    e = jnp.exp(energy - m)
    denom = jnp.sum(e, axis=-1, keepdims=True)
    return e / denom


def _channel_sa_kernel(x_ref, out_ref, attn_ref, *, small_c, bf16_mxu,
                       channels_on_lanes):
    q = x_ref[...]
    if q.dtype != jnp.float32:
        q = q.astype(jnp.float32)

    if small_c:
        # q: (Bt, C, HW) with C <= _SMALL_C_MAX.  VPU/XLU path: no MXU padding,
        # only broadcast multiplies and lane/sublane reductions.
        _, C, _ = q.shape
        cols = []
        for j in range(C):
            qj = q[:, j:j + 1, :]                                  # (Bt, 1, HW)
            cols.append(jnp.sum(q * qj, axis=-1, keepdims=True))   # (Bt, C, 1)
        energy = jnp.concatenate(cols, axis=-1)                    # (Bt, C, C)
        attn = _softmax_lastdim(energy)
        attn_ref[...] = attn.astype(attn_ref.dtype)
        rows = []
        for d in range(C):
            w = attn[:, :, d:d + 1]                                # (Bt, C, 1)
            rows.append(jnp.sum(w * q, axis=1, keepdims=True))     # (Bt, 1, HW)
        out = jnp.concatenate(rows, axis=1)                        # (Bt, C, HW)
        out_ref[...] = out.astype(out_ref.dtype)
        return

    # MXU path.  bf16 operands only affect the Gram-matrix / recombination
    # inputs; accumulation and the softmax stay in f32.
    lhs = q.astype(jnp.bfloat16) if bf16_mxu else q

    if channels_on_lanes:
        # q: (Bt, HW, C) -- lane-dense layout.  Contract the HW axis directly.
        energy = lax.dot_general(
            lhs, lhs, (((1,), (1,)), ((0,), (0,))),
            preferred_element_type=jnp.float32)                    # (Bt, C, C)
        attn = _softmax_lastdim(energy)
        attn_ref[...] = attn.astype(attn_ref.dtype)
        a = attn.astype(jnp.bfloat16) if bf16_mxu else attn
        # out_t[b,l,d] = sum_c q_t[b,l,c] * attn[b,c,d]  (== out[b,d,l])
        out = lax.dot_general(
            lhs, a, (((2,), (1,)), ((0,), (0,))),
            preferred_element_type=jnp.float32)                    # (Bt, HW, C)
    else:
        # q: (Bt, C, HW).  energy[b] = q[b] @ q[b]^T (contract HW, no transpose
        # materialized).
        energy = lax.dot_general(
            lhs, lhs, (((2,), (2,)), ((0,), (0,))),
            preferred_element_type=jnp.float32)                    # (Bt, C, C)
        attn = _softmax_lastdim(energy)
        attn_ref[...] = attn.astype(attn_ref.dtype)
        a = attn.astype(jnp.bfloat16) if bf16_mxu else attn
        # out[b] = attention[b]^T @ q[b]: contract both operands over channels.
        out = lax.dot_general(
            a, lhs, (((1,), (1,)), ((0,), (0,))),
            preferred_element_type=jnp.float32)                    # (Bt, C, HW)

    out_ref[...] = out.astype(out_ref.dtype)


def _tpu_vmem_and_multicore():
    """(physical VMEM bytes per core, >1 TensorCore per chip?) with fallbacks."""
    vmem_cap = 64 << 20   # conservative default if the query fails
    multicore = False
    try:
        info = pltpu.get_tpu_info()
        vmem_cap = int(getattr(info, "vmem_capacity_bytes", 0) or (128 << 20))
        for attr in ("num_cores", "core_count", "tensorcore_count",
                     "num_tensorcores"):
            v = getattr(info, attr, None)
            if v:
                multicore = int(v) > 1
                break
    except Exception:
        pass
    # Heuristic: 64 MiB/TC parts (v7x) have 2 TensorCores per chip.
    if vmem_cap <= (64 << 20):
        multicore = True
    return vmem_cap, multicore


def _per_step_vmem_bytes(bt, C, HW, itemsize, small_c):
    """Honest per-grid-step VMEM estimate: double-buffered block buffers for
    input/output/attention plus the in-kernel f32 temporaries (q/energy/e/attn/
    out values; the small-C VPU path keeps a few extra slab-sized products)."""
    in_blk = bt * C * HW * itemsize
    out_blk = bt * C * HW * itemsize
    attn_blk = bt * C * C * itemsize
    pipeline = 2 * (in_blk + out_blk + attn_blk)   # double buffering
    slab_f32 = bt * C * HW * 4
    cc_f32 = bt * C * C * 4
    temps = (4 if small_c else 3) * slab_f32 + 4 * cc_f32
    return pipeline + temps


def _pick_batch_tile(B, C, HW, itemsize, small_c, budget_bytes,
                     prefer_even_steps):
    """Largest divisor of B whose per-step footprint fits the budget.

    prefer_even_steps (multi-TensorCore parts): prefer a tile count that is an
    even number >= 2 so the sharded "parallel" axis never leaves a core idle on
    the last step.  Single-core parts simply maximize the slab (grid is a
    serial loop; bigger slabs = bigger DMAs on a memory-bound kernel).
    """
    fits = [d for d in range(1, B + 1)
            if B % d == 0
            and _per_step_vmem_bytes(d, C, HW, itemsize, small_c) <= budget_bytes]
    if not fits:
        # TODO(synk): for huge C*HW on 64 MiB-VMEM parts, add an HW-chunked
        # two-pass path (accumulate energy over HW chunks, then stream out in
        # HW chunks) instead of falling back to bt=1 with a raised VMEM limit.
        return 1
    if prefer_even_steps:
        even = [d for d in fits if (B // d) >= 2 and (B // d) % 2 == 0]
        if even:
            return max(even)
    return max(fits)


def channel_self_attention(x):
    """x: (B, C, H, W) -> (out: (B, C, H, W), attention: (B, C, C))."""
    B, C, H, W = x.shape
    HW = H * W
    itemsize = x.dtype.itemsize

    small_c = C <= _SMALL_C_MAX
    # Lane-dense layout flip: put C on the lane axis when HW would pad badly.
    channels_on_lanes = (not small_c) and (HW % 128 != 0) and (C % 128 == 0)
    bf16_mxu = (not small_c) and (C >= _BF16_MXU_MIN_C)

    xq = x.reshape(B, C, HW)
    if channels_on_lanes:
        xk = jnp.swapaxes(xq, 1, 2)          # (B, HW, C)
        in_block = lambda bt: (bt, HW, C)
        out_struct_shape = (B, HW, C)
    else:
        xk = xq                              # (B, C, HW)
        in_block = lambda bt: (bt, C, HW)
        out_struct_shape = (B, C, HW)

    # Generation-aware VMEM budget: ~3/4 of physical per-core VMEM as the
    # scoped limit (96 MiB on 128 MiB parts, 48 MiB on 64 MiB parts), 85% of
    # that as the slab budget.
    vmem_cap, multicore = _tpu_vmem_and_multicore()
    vmem_limit = max(32 << 20, min((vmem_cap * 3) // 4, 100 << 20))
    budget = int(vmem_limit * 0.85)

    bt = _pick_batch_tile(B, C, HW, itemsize, small_c, budget,
                          prefer_even_steps=multicore)
    per_step = _per_step_vmem_bytes(bt, C, HW, itemsize, small_c)
    if per_step > budget:
        # Guaranteed-run fallback: raise the scoped limit toward physical.
        vmem_limit = min(vmem_cap - (4 << 20),
                         max(vmem_limit, per_step + (8 << 20)))
    grid = (B // bt,)

    # NOTE: lane-padding the (B, C, C) attention writeback for mid-sized,
    # non-128-multiple C would need padded in-kernel compute plus a wrapper
    # slice; skipped here since attn traffic is small relative to the slabs.

    kernel = functools.partial(
        _channel_sa_kernel,
        small_c=small_c,
        bf16_mxu=bf16_mxu,
        channels_on_lanes=channels_on_lanes,
    )

    cost = pl.CostEstimate(
        flops=4 * B * C * C * HW,                         # two batched matmuls
        transcendentals=B * C * C,                        # softmax exp
        bytes_accessed=(2 * B * C * HW + B * C * C) * itemsize,
    )

    out_flat, attn = pl.pallas_call(
        kernel,
        out_shape=(
            jax.ShapeDtypeStruct(out_struct_shape, x.dtype),
            jax.ShapeDtypeStruct((B, C, C), x.dtype),
        ),
        grid_spec=pltpu.PrefetchScalarGridSpec(
            num_scalar_prefetch=0,
            grid=grid,
            in_specs=[
                pl.BlockSpec(in_block(bt), lambda b: (b, 0, 0)),
            ],
            out_specs=[
                pl.BlockSpec(in_block(bt), lambda b: (b, 0, 0)),
                pl.BlockSpec((bt, C, C), lambda b: (b, 0, 0)),
            ],
        ),
        compiler_params=pltpu.CompilerParams(
            dimension_semantics=("parallel",),
            vmem_limit_bytes=int(vmem_limit),
        ),
        cost_estimate=cost,
    )(xk)

    if channels_on_lanes:
        out_flat = jnp.swapaxes(out_flat, 1, 2)           # back to (B, C, HW)
    return out_flat.reshape(B, C, H, W), attn


def _reference(x):
    B, C, H, W = x.shape
    q = x.reshape(B, C, H * W)
    energy = jnp.einsum("bcl,bdl->bcd", q, q)
    attn = jax.nn.softmax(energy, axis=-1)
    out = jnp.einsum("bcd,bcl->bdl", attn, q)             # attention^T @ q
    return out.reshape(B, C, H, W), attn


if __name__ == "__main__":
    key = jax.random.PRNGKey(0)
    B, C, H, W = 2, 4, 16, 16
    # Mild scale keeps the softmax away from full saturation so the comparison
    # is meaningful.
    x = 0.1 * jax.random.normal(key, (B, C, H, W), dtype=jnp.float32)

    out, attn = channel_self_attention(x)
    out = jax.block_until_ready(out)
    attn = jax.block_until_ready(attn)

    ref_out, ref_attn = _reference(x)
    assert out.shape == (B, C, H, W)
    assert attn.shape == (B, C, C)
    # Exact-divide softmax restores tight f32 parity (was 1e-3 with the approx
    # reciprocal).
    assert jnp.allclose(attn, ref_attn, atol=1e-4, rtol=1e-4)
    assert jnp.allclose(out, ref_out, atol=1e-4, rtol=1e-4)

    print("KERNEL_OK")
</pallas_src>

<mosaic_0001>
module attributes {stable_mosaic.version = 11 : i64} {
  func.func @_channel_sa_kernel(%arg0: i32, %arg1: memref<1x4x256xf32, #tpu.memory_space<vmem>>, %arg2: memref<1x4x256xf32, #tpu.memory_space<vmem>>, %arg3: memref<1x4x4xf32, #tpu.memory_space<vmem>>) attributes {dimension_semantics = [#tpu.dimension_semantics<parallel>], iteration_bounds = array<i64: 2>, scalar_prefetch = 0 : i64, scratch_operands = 0 : i64, tpu.core_type = #tpu.core_type<tc>, window_params = [{transform_indices = @transform_0, window_bounds = array<i64: 1, 4, 256>}, {transform_indices = @transform_1, window_bounds = array<i64: 1, 4, 256>}, {transform_indices = @transform_2, window_bounds = array<i64: 1, 4, 4>}]} {
    %c0 = arith.constant 0 : index
    %c0_0 = arith.constant 0 : index
    %c0_1 = arith.constant 0 : index
    %0 = vector.load %arg1[%c0, %c0_0, %c0_1] : memref<1x4x256xf32, #tpu.memory_space<vmem>>, vector<1x4x256xf32>
    %1 = vector.extract_strided_slice %0 {offsets = [0, 0, 0], sizes = [1, 1, 256], strides = [1, 1, 1]} : vector<1x4x256xf32> to vector<1x1x256xf32>
    %2 = vector.broadcast %1 : vector<1x1x256xf32> to vector<1x4x256xf32>
    %3 = arith.mulf %0, %2 : vector<1x4x256xf32>
    %cst = arith.constant dense<0.000000e+00> : vector<1x4xf32>
    %4 = vector.multi_reduction <add>, %3, %cst [2] : vector<1x4x256xf32> to vector<1x4xf32>
    %5 = vector.shape_cast %4 : vector<1x4xf32> to vector<1x4x1xf32>
    %6 = vector.extract_strided_slice %0 {offsets = [0, 1, 0], sizes = [1, 1, 256], strides = [1, 1, 1]} : vector<1x4x256xf32> to vector<1x1x256xf32>
    %7 = vector.broadcast %6 : vector<1x1x256xf32> to vector<1x4x256xf32>
    %8 = arith.mulf %0, %7 : vector<1x4x256xf32>
    %cst_2 = arith.constant dense<0.000000e+00> : vector<1x4xf32>
    %9 = vector.multi_reduction <add>, %8, %cst_2 [2] : vector<1x4x256xf32> to vector<1x4xf32>
    %10 = vector.shape_cast %9 : vector<1x4xf32> to vector<1x4x1xf32>
    %11 = vector.extract_strided_slice %0 {offsets = [0, 2, 0], sizes = [1, 1, 256], strides = [1, 1, 1]} : vector<1x4x256xf32> to vector<1x1x256xf32>
    %12 = vector.broadcast %11 : vector<1x1x256xf32> to vector<1x4x256xf32>
    %13 = arith.mulf %0, %12 : vector<1x4x256xf32>
    %cst_3 = arith.constant dense<0.000000e+00> : vector<1x4xf32>
    %14 = vector.multi_reduction <add>, %13, %cst_3 [2] : vector<1x4x256xf32> to vector<1x4xf32>
    %15 = vector.shape_cast %14 : vector<1x4xf32> to vector<1x4x1xf32>
    %16 = vector.extract_strided_slice %0 {offsets = [0, 3, 0], sizes = [1, 1, 256], strides = [1, 1, 1]} : vector<1x4x256xf32> to vector<1x1x256xf32>
    %17 = vector.broadcast %16 : vector<1x1x256xf32> to vector<1x4x256xf32>
    %18 = arith.mulf %0, %17 : vector<1x4x256xf32>
    %cst_4 = arith.constant dense<0.000000e+00> : vector<1x4xf32>
    %19 = vector.multi_reduction <add>, %18, %cst_4 [2] : vector<1x4x256xf32> to vector<1x4xf32>
    %20 = vector.shape_cast %19 : vector<1x4xf32> to vector<1x4x1xf32>
    %21 = tpu.concatenate %5, %10, %15, %20 in 2 : vector<1x4x1xf32>, vector<1x4x1xf32>, vector<1x4x1xf32>, vector<1x4x1xf32> -> vector<1x4x4xf32>
    %cst_5 = arith.constant dense<0xFF800000> : vector<1x4xf32>
    %22 = vector.multi_reduction <maximumf>, %21, %cst_5 [2] : vector<1x4x4xf32> to vector<1x4xf32>
    %23 = vector.shape_cast %22 : vector<1x4xf32> to vector<1x4x1xf32>
    %24 = vector.broadcast %23 : vector<1x4x1xf32> to vector<1x4x4xf32>
    %25 = arith.subf %21, %24 : vector<1x4x4xf32>
    %26 = math.exp %25 : vector<1x4x4xf32>
    %cst_6 = arith.constant dense<0.000000e+00> : vector<1x4xf32>
    %27 = vector.multi_reduction <add>, %26, %cst_6 [2] : vector<1x4x4xf32> to vector<1x4xf32>
    %28 = vector.shape_cast %27 : vector<1x4xf32> to vector<1x4x1xf32>
    %29 = vector.broadcast %28 : vector<1x4x1xf32> to vector<1x4x4xf32>
    %30 = arith.divf %26, %29 : vector<1x4x4xf32>
    %c0_7 = arith.constant 0 : index
    %c0_8 = arith.constant 0 : index
    %c0_9 = arith.constant 0 : index
    %31 = vector.load %arg3[%c0_7, %c0_8, %c0_9] : memref<1x4x4xf32, #tpu.memory_space<vmem>>, vector<1x4x4xf32>
    tpu.vector_store %arg3[%c0_7, %c0_8, %c0_9], %30 {strides = array<i32>} : memref<1x4x4xf32, #tpu.memory_space<vmem>>, vector<1x4x4xf32>,
    %32 = vector.extract_strided_slice %30 {offsets = [0, 0, 0], sizes = [1, 4, 1], strides = [1, 1, 1]} : vector<1x4x4xf32> to vector<1x4x1xf32>
    %33 = vector.broadcast %32 : vector<1x4x1xf32> to vector<1x4x256xf32>
    %34 = arith.mulf %33, %0 : vector<1x4x256xf32>
    %cst_10 = arith.constant dense<0.000000e+00> : vector<1x256xf32>
    %35 = vector.multi_reduction <add>, %34, %cst_10 [1] : vector<1x4x256xf32> to vector<1x256xf32>
    %36 = vector.shape_cast %35 : vector<1x256xf32> to vector<1x1x256xf32>
    %37 = vector.extract_strided_slice %30 {offsets = [0, 0, 1], sizes = [1, 4, 1], strides = [1, 1, 1]} : vector<1x4x4xf32> to vector<1x4x1xf32>
    %38 = vector.broadcast %37 : vector<1x4x1xf32> to vector<1x4x256xf32>
    %39 = arith.mulf %38, %0 : vector<1x4x256xf32>
    %cst_11 = arith.constant dense<0.000000e+00> : vector<1x256xf32>
    %40 = vector.multi_reduction <add>, %39, %cst_11 [1] : vector<1x4x256xf32> to vector<1x256xf32>
    %41 = vector.shape_cast %40 : vector<1x256xf32> to vector<1x1x256xf32>
    %42 = vector.extract_strided_slice %30 {offsets = [0, 0, 2], sizes = [1, 4, 1], strides = [1, 1, 1]} : vector<1x4x4xf32> to vector<1x4x1xf32>
    %43 = vector.broadcast %42 : vector<1x4x1xf32> to vector<1x4x256xf32>
    %44 = arith.mulf %43, %0 : vector<1x4x256xf32>
    %cst_12 = arith.constant dense<0.000000e+00> : vector<1x256xf32>
    %45 = vector.multi_reduction <add>, %44, %cst_12 [1] : vector<1x4x256xf32> to vector<1x256xf32>
    %46 = vector.shape_cast %45 : vector<1x256xf32> to vector<1x1x256xf32>
    %47 = vector.extract_strided_slice %30 {offsets = [0, 0, 3], sizes = [1, 4, 1], strides = [1, 1, 1]} : vector<1x4x4xf32> to vector<1x4x1xf32>
    %48 = vector.broadcast %47 : vector<1x4x1xf32> to vector<1x4x256xf32>
    %49 = arith.mulf %48, %0 : vector<1x4x256xf32>
    %cst_13 = arith.constant dense<0.000000e+00> : vector<1x256xf32>
    %50 = vector.multi_reduction <add>, %49, %cst_13 [1] : vector<1x4x256xf32> to vector<1x256xf32>
    %51 = vector.shape_cast %50 : vector<1x256xf32> to vector<1x1x256xf32>
    %52 = tpu.concatenate %36, %41, %46, %51 in 1 : vector<1x1x256xf32>, vector<1x1x256xf32>, vector<1x1x256xf32>, vector<1x1x256xf32> -> vector<1x4x256xf32>
    %c0_14 = arith.constant 0 : index
    %c0_15 = arith.constant 0 : index
    %c0_16 = arith.constant 0 : index
    %53 = vector.load %arg2[%c0_14, %c0_15, %c0_16] : memref<1x4x256xf32, #tpu.memory_space<vmem>>, vector<1x4x256xf32>
    tpu.vector_store %arg2[%c0_14, %c0_15, %c0_16], %52 {strides = array<i32>} : memref<1x4x256xf32, #tpu.memory_space<vmem>>, vector<1x4x256xf32>,
    return
  }
  func.func @transform_0(%arg0: i32) -> (i32, i32, i32) {
    %c0_i32 = arith.constant 0 : i32
    %c0_i32_0 = arith.constant 0 : i32
    %c0_i32_1 = arith.constant 0 : i32
    return %arg0, %c0_i32, %c0_i32_0 : i32, i32, i32
  }
  func.func @transform_1(%arg0: i32) -> (i32, i32, i32) {
    %c0_i32 = arith.constant 0 : i32
    %c0_i32_0 = arith.constant 0 : i32
    %c0_i32_1 = arith.constant 0 : i32
    return %arg0, %c0_i32, %c0_i32_0 : i32, i32, i32
  }
  func.func @transform_2(%arg0: i32) -> (i32, i32, i32) {
    %c0_i32 = arith.constant 0 : i32
    %c0_i32_0 = arith.constant 0 : i32
    %c0_i32_1 = arith.constant 0 : i32
    return %arg0, %c0_i32, %c0_i32_0 : i32, i32, i32
  }
}

</mosaic_0001>

<llo_original>
// kernel: tpu_custom_call.1
$region0: #{tpu_custom_call.1}
  #allocation0 [shape = 'u32[]', space=smem, size = 0x4, offset = 0x4, fixed_abs, tag = 'smem constant byte address 0x4 - core index']
  #allocation1 [shape = 'u32[144,128]{1,0:T(1,128)}', space=vmem, size = 0x12000, scoped, tag = 'internal scratch']
  %s0 = inlined_call_operand.hbm [shape: f32[2,4,256], index: 0, kind: input, shape index: {}]
  %s1 = inlined_call_operand.hbm [shape: f32[2,4,256], index: 1, kind: output, shape index: {0}]
  %s2 = inlined_call_operand.hbm [shape: f32[2,4,4], index: 2, kind: output, shape index: {1}]
  %3 = xla_tuple %s1, %s2
  %s4 = sld [smem:[#allocation0]]
  $region49: #{tpu_custom_call.1} parent=0
    _
  %s6 = ssub.s32 1, %s4
  %s7 = scalar_select 0, %s6, %s4
  $region1: #{tpu_custom_call.1} parent=0
    #allocation2 [shape = 'u8[8192]{0}', space=vmem, size = 0x2000, scoped, tag = 'input window, operand 0']
    #allocation3 [shape = 's32[2]{0}', space=sflag, size = 0x8, scoped, tag = 'scoped memory for tpu_custom_call.1']
    #allocation4 [shape = 's32[2]{0}', space=sflag, size = 0x8, scoped, tag = 'scoped memory for tpu_custom_call.1']
    #allocation5 [shape = 'u8[8192]{0}', space=vmem, size = 0x2000, scoped, tag = 'output window, operand 0']
    #allocation6 [shape = 'u8[4096]{0}', space=vmem, size = 0x1000, scoped, tag = 'output window, operand 1']
    #allocation7 [shape = 's32[2]{0}', space=sflag, size = 0x8, scoped, tag = 'scoped memory for tpu_custom_call.1']
    %8 = vsyncpa [#allocation3], 0
    %s9 = scalar_lea.sflag [#allocation3], 1
    %10 = vsyncpa %s9, 0
    %11 = vsyncpa [#allocation4], 0
    %s12 = scalar_lea.sflag [#allocation4], 1
    %13 = vsyncpa %s12, 0
    %14 = vsyncpa [#allocation7], 0
    %s15 = scalar_lea.sflag [#allocation7], 1
    %16 = vsyncpa %s15, 0
    loop: start=0, step=1, limit=4
    $region2: #{tpu_custom_call.1} parent=1 // loop_pre_header
      _
    $region3: #{tpu_custom_call.1} parent=1 // loop_header
      %s18 = sphi 0, %s22
      %p19 = scmp.ge.s32.totalorder %s18, 4
      %s28 = sphi 0, %s30
      %s31 = sphi 0, %s28
      %s32 = sphi 0, %s31
      %s48 = sphi 0, %s32
      %s54 = sphi 0, %s56
      %s57 = sphi 0, %s54
      %s58 = sphi 0, %s57
      %s74 = sphi 0, %s58
      %s80 = sphi 0, %s82
      %s83 = sphi 0, %s80
      %s84 = sphi 0, %s83
      %s100 = sphi 0, %s84
    $region4: #{tpu_custom_call.1} parent=1 // loop_header_branch
      %21 = sbr.rel (%p19) target = $region8
    $region5: #{tpu_custom_call.1} parent=1 // loop_body
      %s23 = ssub.s32 %s18, 1
      %s24 = ssub.s32 %s18, 2
      %s25 = sadd.s32 %s18, 1
      %s26 = ssub.s32 %s18, %s25
      %p27 = scmp.eq.s32.totalorder %s26, 0
      %s29 = sadd.s32 %s28, 1
      %s30 = scalar_select %p27, %s28, %s29
      %p33 = pneg %p27
      %p34 = scmp.eq.s32.totalorder %s18, 1
      %p35 = por %p33, %p34
      %p36 = scmp.ne.s32.totalorder %s28, %s31
      %p37 = scmp.eq.s32.totalorder %s18, 0
      %p38 = por %p36, %p37
      %p39 = scmp.ne.s32.totalorder %s28, %s31
      %p40 = scmp.eq.s32.totalorder %s23, 1
      %p41 = por %p39, %p40
      %p42 = scmp.ne.s32.totalorder %s31, %s32
      %p43 = scmp.eq.s32.totalorder %s23, 0
      %p44 = por %p42, %p43
      %p45 = scmp.ne.s32.totalorder %s31, %s32
      %p46 = scmp.eq.s32.totalorder %s24, 1
      %p47 = por %p45, %p46
      %p49 = scmp.ne.s32.totalorder %s32, %s48
      %p50 = scmp.eq.s32.totalorder %s24, 0
      %p51 = por %p49, %p50
      %s52 = ssub.s32 %s18, %s25
      %p53 = scmp.eq.s32.totalorder %s52, 0
      %s55 = sadd.s32 %s54, 1
      %s56 = scalar_select %p53, %s54, %s55
      %p59 = pneg %p53
      %p60 = scmp.eq.s32.totalorder %s18, 1
      %p61 = por %p59, %p60
      %p62 = scmp.ne.s32.totalorder %s54, %s57
      %p63 = scmp.eq.s32.totalorder %s18, 0
      %p64 = por %p62, %p63
      %p65 = scmp.ne.s32.totalorder %s54, %s57
      %p66 = scmp.eq.s32.totalorder %s23, 1
      %p67 = por %p65, %p66
      %p68 = scmp.ne.s32.totalorder %s57, %s58
      %p69 = scmp.eq.s32.totalorder %s23, 0
      %p70 = por %p68, %p69
      %p71 = scmp.ne.s32.totalorder %s57, %s58
      %p72 = scmp.eq.s32.totalorder %s24, 1
      %p73 = por %p71, %p72
      %p75 = scmp.ne.s32.totalorder %s58, %s74
      %p76 = scmp.eq.s32.totalorder %s24, 0
      %p77 = por %p75, %p76
      %s78 = ssub.s32 %s18, %s25
      %p79 = scmp.eq.s32.totalorder %s78, 0
      %s81 = sadd.s32 %s80, 1
      %s82 = scalar_select %p79, %s80, %s81
      %p85 = pneg %p79
      %p86 = scmp.eq.s32.totalorder %s18, 1
      %p87 = por %p85, %p86
      %p88 = scmp.ne.s32.totalorder %s80, %s83
      %p89 = scmp.eq.s32.totalorder %s18, 0
      %p90 = por %p88, %p89
      %p91 = scmp.ne.s32.totalorder %s80, %s83
      %p92 = scmp.eq.s32.totalorder %s23, 1
      %p93 = por %p91, %p92
      %p94 = scmp.ne.s32.totalorder %s83, %s84
      %p95 = scmp.eq.s32.totalorder %s23, 0
      %p96 = por %p94, %p95
      %p97 = scmp.ne.s32.totalorder %s83, %s84
      %p98 = scmp.eq.s32.totalorder %s24, 1
      %p99 = por %p97, %p98
      %p101 = scmp.ne.s32.totalorder %s84, %s100
      %p102 = scmp.eq.s32.totalorder %s24, 0
      %p103 = por %p101, %p102
      %p104 = scmp.le.s32.totalorder 1, %s18
      %p105 = scmp.lt.s32.totalorder %s18, 3
      %p106 = pnand %p104, %p105
      %p107 = pneg %p106
      // Predicated region
      $region9: #{tpu_custom_call.1} parent=5 // pred_check
        _
      $region10: #{tpu_custom_call.1} parent=5 // pred_check_branch
        %109 = sbr.rel (%p106) target = $region12
      $region11: #{tpu_custom_call.1} parent=5 // pred_region
        %s110 = ssub.s32 %s18, 1
      $region12: #{tpu_custom_call.1} parent=5 // pred_fallthru
        _
      %p111 = scmp.lt.s32.totalorder %s18, 2
      // Predicated region
      $region13: #{tpu_custom_call.1} parent=5 // pred_check
        %p112 = pneg %p111
      $region14: #{tpu_custom_call.1} parent=5 // pred_check_branch
        %114 = sbr.rel (%p112) target = $region16
      $region15: #{tpu_custom_call.1} parent=5 // pred_region
        // Predicated region
        $region17: #{tpu_custom_call.1} parent=15 // pred_check
          %p115 = pneg %p38
        $region18: #{tpu_custom_call.1} parent=15 // pred_check_branch
          %117 = sbr.rel (%p115) target = $region20
        $region19: #{tpu_custom_call.1} parent=15 // pred_region
          %s118 = sand.u32 %s28, 1
          %s119 = scalar_lea.sflag [#allocation3], %s118
          %s120 = sand.u32 %s28, 1
          %s121 = smul.addr %s120, 8
          %s122 = scalar_lea.vmem [#allocation2], %s121
          %s124 = ssub.s32 128, 128
          %125 = vsyncadd %s119, %s124
          %s126 = smul.addr %s18, 2
          %s127 = smul.addr %s126, 64
          %s128 = scalar_lea.hbm %s0, %s127
          %s130 = sshll.u32 %s122, 4
          %s131 = int_to_ptr.vmem [resolvable:$true] %s130
          %133 = dma.hbm_to_vmem [thread:$0]  %s128, 128, %s131, %s119
        $region20: #{tpu_custom_call.1} parent=15 // pred_fallthru
          _
      $region16: #{tpu_custom_call.1} parent=5 // pred_fallthru
        _
      %p134 = scmp.le.s32.totalorder 1, %s18
      %p135 = scmp.lt.s32.totalorder %s18, 3
      %p136 = pnand %p134, %p135
      %p137 = pneg %p136
      // Predicated region
      $region21: #{tpu_custom_call.1} parent=5 // pred_check
        _
      $region22: #{tpu_custom_call.1} parent=5 // pred_check_branch
        %139 = sbr.rel (%p136) target = $region24
      $region23: #{tpu_custom_call.1} parent=5 // pred_region
        %s140 = ssub.s32 %s18, 1
        %s141 = sand.u32 %s31, 1
        %s142 = scalar_lea.sflag [#allocation3], %s141
        %s143 = sand.u32 %s31, 1
        %s144 = smul.addr %s143, 8
        %s145 = scalar_lea.vmem [#allocation2], %s144
        // Predicated region
        $region25: #{tpu_custom_call.1} parent=23 // pred_check
          %p146 = pneg %p44
        $region26: #{tpu_custom_call.1} parent=23 // pred_check_branch
          %148 = sbr.rel (%p146) target = $region28
        $region27: #{tpu_custom_call.1} parent=23 // pred_region
          %149 = dma.done %s142, 128
        $region28: #{tpu_custom_call.1} parent=23 // pred_fallthru
          _
        %s150 = sand.u32 %s31, 1
        %s151 = scalar_lea.sflag [#allocation3], %s150
        %s152 = sand.u32 %s31, 1
        %s153 = smul.addr %s152, 8
        %s154 = scalar_lea.vmem [#allocation2], %s153
        %p155 = pneg %p44
        %p156 = pneg %p41
        %p157 = pneg %p70
        %p158 = pneg %p67
        %s159 = sand.u32 %s57, 1
        %s160 = scalar_lea.sflag [#allocation4], %s159
        %s161 = sand.u32 %s57, 1
        %s162 = smul.addr %s161, 8
        %s163 = scalar_lea.vmem [#allocation5], %s162
        %p164 = pneg %p96
        %p165 = pneg %p93
        %s166 = sand.u32 %s83, 1
        %s167 = scalar_lea.sflag [#allocation7], %s166
        %s168 = sand.u32 %s83, 1
        %s169 = smul.addr %s168, 4
        %s170 = scalar_lea.vmem [#allocation6], %s169
        %v171 = vld [vmem:[%s145] sm:$0xff]
        %v173 = vlaneseq
        %v174 = vshrl.u32 %v173, 7
        %v175 = vsub.s32 0, %v174
        %v176 = vrot.slane %v171, %v175
        %v177 = vlaneseq
        %v178 = vshrl.u32 %v177, 7
        %v179 = vsub.s32 4, %v178
        %v180 = vrot.slane %v171, %v179
        %v183 = vlaneseq
        %v184 = vshrl.u32 %v183, 7
        %v185 = vsub.s32 0, %v184
        %v186 = vrot.slane %v176, %v185
        %v187 = vlaneseq
        %v188 = vshrl.u32 %v187, 7
        %v189 = vsub.s32 0, %v188
        %v190 = vrot.slane %v180, %v189
        %v193 = vcombine.low %v186, %v190
        %v195 = vmul.f32 %v171, %v193
        %v197 = vcombine.high %v195, %v195
        %vm199 = vcmask 1043456
        %v200 = vsel %vm199, %v195, 0.0
        %v201 = vsel %vm199, %v197, 0.0
        %v202 = vadd.f32 %v200, %v201
        %203 = vadd.xlane.f32.xlu0 %v202
        %v204 = vpop.xlane.xlu0 %203
        %v205 = vlaneseq
        %v206 = vshrl.u32 %v205, 7
        %v207 = vsub.s32 1, %v206
        %v208 = vrot.slane %v171, %v207
        %v209 = vlaneseq
        %v210 = vshrl.u32 %v209, 7
        %v211 = vsub.s32 5, %v210
        %v212 = vrot.slane %v171, %v211
        %v215 = vlaneseq
        %v216 = vshrl.u32 %v215, 7
        %v217 = vsub.s32 1, %v216
        %v218 = vrot.slane %v208, %v217
        %v219 = vlaneseq
        %v220 = vshrl.u32 %v219, 7
        %v221 = vsub.s32 1, %v220
        %v222 = vrot.slane %v212, %v221
        %v225 = vcombine.low %v218, %v222
        %v227 = vmul.f32 %v171, %v225
        %v229 = vcombine.high %v227, %v227
        %v231 = vsel %vm199, %v227, 0.0
        %v232 = vsel %vm199, %v229, 0.0
        %v233 = vadd.f32 %v231, %v232
        %234 = vadd.xlane.f32.xlu0 %v233
        %v235 = vpop.xlane.xlu0 %234
        %v236 = vlaneseq
        %v237 = vshrl.u32 %v236, 7
        %v238 = vsub.s32 2, %v237
        %v239 = vrot.slane %v171, %v238
        %v240 = vlaneseq
        %v241 = vshrl.u32 %v240, 7
        %v242 = vsub.s32 6, %v241
        %v243 = vrot.slane %v171, %v242
        %v246 = vlaneseq
        %v247 = vshrl.u32 %v246, 7
        %v248 = vsub.s32 2, %v247
        %v249 = vrot.slane %v239, %v248
        %v250 = vlaneseq
        %v251 = vshrl.u32 %v250, 7
        %v252 = vsub.s32 2, %v251
        %v253 = vrot.slane %v243, %v252
        %v256 = vcombine.low %v249, %v253
        %v258 = vmul.f32 %v171, %v256
        %v260 = vcombine.high %v258, %v258
        %v262 = vsel %vm199, %v258, 0.0
        %v263 = vsel %vm199, %v260, 0.0
        %v264 = vadd.f32 %v262, %v263
        %265 = vadd.xlane.f32.xlu0 %v264
        %v266 = vpop.xlane.xlu0 %265
        %v267 = vlaneseq
        %v268 = vshrl.u32 %v267, 7
        %v269 = vsub.s32 3, %v268
        %v270 = vrot.slane %v171, %v269
        %v271 = vlaneseq
        %v272 = vshrl.u32 %v271, 7
        %v273 = vsub.s32 7, %v272
        %v274 = vrot.slane %v171, %v273
        %v277 = vlaneseq
        %v278 = vshrl.u32 %v277, 7
        %v279 = vsub.s32 3, %v278
        %v280 = vrot.slane %v270, %v279
        %v281 = vlaneseq
        %v282 = vshrl.u32 %v281, 7
        %v283 = vsub.s32 3, %v282
        %v284 = vrot.slane %v274, %v283
        %v287 = vcombine.low %v280, %v284
        %v289 = vmul.f32 %v171, %v287
        %v291 = vcombine.high %v289, %v289
        %v293 = vsel %vm199, %v289, 0.0
        %v294 = vsel %vm199, %v291, 0.0
        %v295 = vadd.f32 %v293, %v294
        %296 = vadd.xlane.f32.xlu0 %v295
        %v297 = vpop.xlane.xlu0 %296
        %vm298 = vcmask 7168
        %v299 = vsel %vm298, %v204, %v235
        %vm300 = vcmask 15360
        %v301 = vsel %vm300, %v299, %v266
        %vm302 = vcmask 23552
        %v303 = vsel %vm302, %v301, %v297
        %vm304 = vcmask 27648
        %v305 = vsel %vm304, %v303, -inf
        %306 = vmax.xlane.f32.xlu0 %v305
        %v307 = vpop.xlane.xlu0 %306
        %v308 = vsub.f32 %v303, %v307
        %v309 = vmul.f32 %v308, 1.442695
        %v310 = vpow.pop %v309
        %v311 = vsel %vm304, %v310, 0.0
        %312 = vadd.xlane.f32.xlu0 %v311
        %v313 = vpop.xlane.xlu0 %312
        %v314 = vrcp.pop %v313
        %v315 = vmul.f32 %v310, %v314
        %316 = vst.msk [vmem:[%s170] sm:$0xf] %vm304, %v315
        %318 = vset.pattern.permute.xlu0 0
        %319 = vperm.xlu0 %318, %v315
        %v320 = vpop.permute.xlu0 %319
        %v322 = vcombine.high %v171, %v171
        %v324 = vmul.f32 %v320, %v171
        %v325 = vmul.f32 %v320, %v322
        %v326 = vsel %vm199, %v324, 0.0
        %v327 = vrot.slane %v326, 4
        %v328 = vadd.f32 %v326, %v327
        %v329 = vrot.slane %v328, 2
        %v330 = vadd.f32 %v328, %v329
        %v331 = vrot.slane %v330, 1
        %v332 = vadd.f32 %v330, %v331
        %v333 = vsel %vm199, %v325, 0.0
        %v334 = vrot.slane %v333, 4
        %v335 = vadd.f32 %v333, %v334
        %v336 = vrot.slane %v335, 2
        %v337 = vadd.f32 %v335, %v336
        %v338 = vrot.slane %v337, 1
        %v339 = vadd.f32 %v337, %v338
        %340 = vset.pattern.permute.xlu0 1
        %341 = vperm.xlu0 %340, %v315
        %v342 = vpop.permute.xlu0 %341
        %v344 = vmul.f32 %v342, %v171
        %v345 = vmul.f32 %v342, %v322
        %v346 = vsel %vm199, %v344, 0.0
        %v347 = vrot.slane %v346, 4
        %v348 = vadd.f32 %v346, %v347
        %v349 = vrot.slane %v348, 2
        %v350 = vadd.f32 %v348, %v349
        %v351 = vrot.slane %v350, 1
        %v352 = vadd.f32 %v350, %v351
        %v353 = vsel %vm199, %v345, 0.0
        %v354 = vrot.slane %v353, 4
        %v355 = vadd.f32 %v353, %v354
        %v356 = vrot.slane %v355, 2
        %v357 = vadd.f32 %v355, %v356
        %v358 = vrot.slane %v357, 1
        %v359 = vadd.f32 %v357, %v358
        %360 = vset.pattern.permute.xlu0 2
        %361 = vperm.xlu0 %360, %v315
        %v362 = vpop.permute.xlu0 %361
        %v364 = vmul.f32 %v362, %v171
        %v365 = vmul.f32 %v362, %v322
        %v366 = vsel %vm199, %v364, 0.0
        %v367 = vrot.slane %v366, 4
        %v368 = vadd.f32 %v366, %v367
        %v369 = vrot.slane %v368, 2
        %v370 = vadd.f32 %v368, %v369
        %v371 = vrot.slane %v370, 1
        %v372 = vadd.f32 %v370, %v371
        %v373 = vsel %vm199, %v365, 0.0
        %v374 = vrot.slane %v373, 4
        %v375 = vadd.f32 %v373, %v374
        %v376 = vrot.slane %v375, 2
        %v377 = vadd.f32 %v375, %v376
        %v378 = vrot.slane %v377, 1
        %v379 = vadd.f32 %v377, %v378
        %380 = vset.pattern.permute.xlu0 3
        %381 = vperm.xlu0 %380, %v315
        %v382 = vpop.permute.xlu0 %381
        %v384 = vmul.f32 %v382, %v171
        %v385 = vmul.f32 %v382, %v322
        %v386 = vsel %vm199, %v384, 0.0
        %v387 = vrot.slane %v386, 4
        %v388 = vadd.f32 %v386, %v387
        %v389 = vrot.slane %v388, 2
        %v390 = vadd.f32 %v388, %v389
        %v391 = vrot.slane %v390, 1
        %v392 = vadd.f32 %v390, %v391
        %v393 = vsel %vm199, %v385, 0.0
        %v394 = vrot.slane %v393, 4
        %v395 = vadd.f32 %v393, %v394
        %v396 = vrot.slane %v395, 2
        %v397 = vadd.f32 %v395, %v396
        %v398 = vrot.slane %v397, 1
        %v399 = vadd.f32 %v397, %v398
        %vm400 = vcmask 1040384
        %v401 = vsel %vm400, %v332, %v352
        %v402 = vsel %vm400, %v339, %v359
        %vm403 = vcmask 1041408
        %v404 = vsel %vm403, %v401, %v372
        %v405 = vsel %vm403, %v402, %v379
        %vm406 = vcmask 1042432
        %v407 = vsel %vm406, %v404, %v392
        %v408 = vsel %vm406, %v405, %v399
        %v411 = vcombine.low %v407, %v408
        %413 = vst [vmem:[%s163] sm:$0xff] %v411
        %s414 = sand.u32 %s57, 1
        %s415 = scalar_lea.sflag [#allocation4], %s414
        %s416 = sand.u32 %s57, 1
        %s417 = smul.addr %s416, 8
        %s418 = scalar_lea.vmem [#allocation5], %s417
        %s419 = sand.u32 %s83, 1
        %s420 = scalar_lea.sflag [#allocation7], %s419
        %s421 = sand.u32 %s83, 1
        %s422 = smul.addr %s421, 4
        %s423 = scalar_lea.vmem [#allocation6], %s422
        // Predicated region
        $region29: #{tpu_custom_call.1} parent=23 // pred_check
          %p424 = pneg %p67
        $region30: #{tpu_custom_call.1} parent=23 // pred_check_branch
          %426 = sbr.rel (%p424) target = $region32
        $region31: #{tpu_custom_call.1} parent=23 // pred_region
          %s428 = ssub.s32 128, 128
          %429 = vsyncadd %s415, %s428
          %s430 = smul.addr %s23, 2
          %s431 = smul.addr %s430, 64
          %s432 = scalar_lea.hbm %s1, %s431
          %s434 = sshll.u32 %s418, 4
          %s435 = int_to_ptr.vmem [resolvable:$true] %s434
          %437 = dma.vmem_to_hbm [thread:$0]  %s435, 128, %s432, %s415
        $region32: #{tpu_custom_call.1} parent=23 // pred_fallthru
          _
        // Predicated region
        $region33: #{tpu_custom_call.1} parent=23 // pred_check
          %p438 = pneg %p93
        $region34: #{tpu_custom_call.1} parent=23 // pred_check_branch
          %440 = sbr.rel (%p438) target = $region36
        $region35: #{tpu_custom_call.1} parent=23 // pred_region
          %s442 = ssub.s32 64, 64
          %443 = vsyncadd %s420, %s442
          %s444 = smul.addr %s23, 64
          %s445 = scalar_lea.hbm %s2, %s444
          %s447 = sshll.u32 %s423, 4
          %s448 = int_to_ptr.vmem [resolvable:$true] %s447
          %450 = dma.vmem_to_hbm [thread:$0]  %s448, 64, %s445, %s420
        $region36: #{tpu_custom_call.1} parent=23 // pred_fallthru
          _
      $region24: #{tpu_custom_call.1} parent=5 // pred_fallthru
        _
      %p451 = scmp.le.s32.totalorder 2, %s18
      // Predicated region
      $region37: #{tpu_custom_call.1} parent=5 // pred_check
        %p452 = pneg %p451
      $region38: #{tpu_custom_call.1} parent=5 // pred_check_branch
        %454 = sbr.rel (%p452) target = $region40
      $region39: #{tpu_custom_call.1} parent=5 // pred_region
        %s455 = ssub.s32 %s18, 2
        // Predicated region
        $region41: #{tpu_custom_call.1} parent=39 // pred_check
          %p456 = pneg %p73
        $region42: #{tpu_custom_call.1} parent=39 // pred_check_branch
          %458 = sbr.rel (%p456) target = $region44
        $region43: #{tpu_custom_call.1} parent=39 // pred_region
          %s459 = sand.u32 %s58, 1
          %s460 = scalar_lea.sflag [#allocation4], %s459
          %s461 = sand.u32 %s58, 1
          %s462 = smul.addr %s461, 8
          %s463 = scalar_lea.vmem [#allocation5], %s462
          %464 = dma.done %s460, 128
        $region44: #{tpu_custom_call.1} parent=39 // pred_fallthru
          _
        // Predicated region
        $region45: #{tpu_custom_call.1} parent=39 // pred_check
          %p465 = pneg %p99
        $region46: #{tpu_custom_call.1} parent=39 // pred_check_branch
          %467 = sbr.rel (%p465) target = $region48
        $region47: #{tpu_custom_call.1} parent=39 // pred_region
          %s468 = sand.u32 %s84, 1
          %s469 = scalar_lea.sflag [#allocation7], %s468
          %s470 = sand.u32 %s84, 1
          %s471 = smul.addr %s470, 4
          %s472 = scalar_lea.vmem [#allocation6], %s471
          %473 = dma.done %s469, 64
        $region48: #{tpu_custom_call.1} parent=39 // pred_fallthru
          _
      $region40: #{tpu_custom_call.1} parent=5 // pred_fallthru
        _
    $region6: #{tpu_custom_call.1} parent=1 // loop_footer
      %s22 = sadd.s32 1, %s18
    $region7: #{tpu_custom_call.1} parent=1 // loop_footer_branch
      %17 = sbr.rel target = $region3
    $region8: #{tpu_custom_call.1} parent=1 // loop_exit
      _
    %474 = vsyncpa [#allocation3], 1
    %s475 = scalar_lea.sflag [#allocation3], 1
    %476 = vsyncpa %s475, 1
    %477 = vsyncpa [#allocation4], 1
    %s478 = scalar_lea.sflag [#allocation4], 1
    %479 = vsyncpa %s478, 1
    %480 = vsyncpa [#allocation7], 1
    %s481 = scalar_lea.sflag [#allocation7], 1
    %482 = vsyncpa %s481, 1

</llo_original>
